<compile_context>
chip_gen: v6e
topology: v6e:2x2x1
jax: 0.10.0
libtpu: 0.0.40
codegen_flags: <defaults>
</compile_context>

<pallas_src>
import functools

import jax
import jax.numpy as jnp
from jax.experimental import pallas as pl
from jax.experimental.pallas import tpu as pltpu


# Packed parameter slab layout (sublanes x lanes), float32:
#   rows  0:16, lanes 0:8   -> W1^T  (16, 8)
#   rows  0:16, lane  8     -> b1    (16,)
#   rows 16:20, lanes 0:16  -> W2^T  (4, 16)
#   rows 16:20, lane  16    -> b2    (4,)
P_ROWS = 24    # multiple of 8 sublanes
P_COLS = 128   # one full lane tile
IN_F, HID_F, OUT_F = 8, 16, 4


def mlp_kernel(p_ref, xt_ref, ot_ref):
    # Lane-dense layout: batch on the 128-lane axis, features on sublanes.
    p = p_ref[...]                                   # (24, 128) VMEM-resident
    w1t = p[0:HID_F, 0:IN_F]                         # (16, 8)
    b1 = p[0:HID_F, IN_F:IN_F + 1]                   # (16, 1)
    w2t = p[HID_F:HID_F + OUT_F, 0:HID_F]            # (4, 16)
    b2 = p[HID_F:HID_F + OUT_F, HID_F:HID_F + 1]     # (4, 1)

    xt = xt_ref[...]                                            # (8, TB)
    h = jnp.dot(w1t, xt, preferred_element_type=jnp.float32)    # (16, TB)
    h = jnp.maximum(h + b1, 0.0)
    y = jnp.dot(w2t, h, preferred_element_type=jnp.float32)     # (4, TB)
    y = jnp.maximum(y + b2, 0.0)
    ot_ref[...] = y.astype(ot_ref.dtype)


def pack_params(w1, b1, w2, b2):
    """Pack (w1:(8,16), b1:(16,), w2:(16,4), b2:(4,)) into one (24,128) slab."""
    slab = jnp.zeros((P_ROWS, P_COLS), jnp.float32)
    slab = slab.at[0:HID_F, 0:IN_F].set(w1.T.astype(jnp.float32))
    slab = slab.at[0:HID_F, IN_F].set(b1.reshape(HID_F).astype(jnp.float32))
    slab = slab.at[HID_F:HID_F + OUT_F, 0:HID_F].set(w2.T.astype(jnp.float32))
    slab = slab.at[HID_F:HID_F + OUT_F, HID_F].set(b2.reshape(OUT_F).astype(jnp.float32))
    return slab


@functools.partial(jax.jit, static_argnames=("tile_b",))
def mlp_forward(x, w1, b1, w2, b2, *, tile_b=1024):
    """Computes relu(relu(x @ w1 + b1) @ w2 + b2) with a Pallas TPU kernel."""
    B, K = x.shape
    assert K == IN_F
    params = pack_params(w1, b1, w2, b2)

    if B <= tile_b:
        # Single grid step; full-array blocks are always legal on TPU.
        tb, bp = B, B
        xt = x.T
    else:
        # Large batch: tile_b is a multiple of 128 -> lane-dense, unmasked stores.
        tb = tile_b
        bp = pl.cdiv(B, tb) * tb
        xt = jnp.zeros((K, bp), x.dtype).at[:, :B].set(x.T)

    out_t = pl.pallas_call(
        mlp_kernel,
        out_shape=jax.ShapeDtypeStruct((OUT_F, bp), jnp.float32),
        grid_spec=pl.GridSpec(
            grid=(bp // tb,),
            in_specs=[
                # Constant index_map: the weight slab is DMA'd once and stays
                # VMEM-resident across all batch tiles (never re-copied).
                pl.BlockSpec((P_ROWS, P_COLS), lambda i: (0, 0)),
                pl.BlockSpec((K, tb), lambda i: (0, i)),
            ],
            out_specs=pl.BlockSpec((OUT_F, tb), lambda i: (0, i)),
        ),
        compiler_params=pltpu.CompilerParams(
            # Batch tiles are independent -> shard across v7x's two TensorCores.
            dimension_semantics=("parallel",),
        ),
    )(params, xt)

    return out_t[:, :B].T    # back to (B, 4)


def init_params(key):
    # Mimic PyTorch's default nn.Linear init: U(-1/sqrt(fan_in), 1/sqrt(fan_in)).
    k1, k2, k3, k4 = jax.random.split(key, 4)
    bound1 = 1.0 / jnp.sqrt(8.0)
    bound2 = 1.0 / jnp.sqrt(16.0)
    w1 = jax.random.uniform(k1, (8, 16), jnp.float32, -bound1, bound1)
    b1 = jax.random.uniform(k2, (16,), jnp.float32, -bound1, bound1)
    w2 = jax.random.uniform(k3, (16, 4), jnp.float32, -bound2, bound2)
    b2 = jax.random.uniform(k4, (4,), jnp.float32, -bound2, bound2)
    return w1, b1, w2, b2


def reference(x, w1, b1, w2, b2):
    return jnp.maximum(jnp.maximum(x @ w1 + b1, 0.0) @ w2 + b2, 0.0)


if __name__ == "__main__":
    key = jax.random.PRNGKey(0)
    kx, kb, kp = jax.random.split(key, 3)
    w1, b1, w2, b2 = init_params(kp)

    # Small test shape consistent with the module: batch=2, in_features=8.
    x = jax.random.normal(kx, (2, 8), jnp.float32)
    out = jax.block_until_ready(mlp_forward(x, w1, b1, w2, b2))
    assert out.shape == (2, 4)
    assert jnp.allclose(out, reference(x, w1, b1, w2, b2), atol=1e-5, rtol=1e-5)

    # Also exercise the batched-grid path (padding + multiple batch tiles).
    xb = jax.random.normal(kb, (300, 8), jnp.float32)
    outb = jax.block_until_ready(mlp_forward(xb, w1, b1, w2, b2, tile_b=128))
    assert outb.shape == (300, 4)
    assert jnp.allclose(outb, reference(xb, w1, b1, w2, b2), atol=1e-5, rtol=1e-5)

    print("KERNEL_OK")
</pallas_src>

<mosaic_0001>
module attributes {stable_mosaic.version = 11 : i64} {
  func.func @mlp_kernel(%arg0: i32, %arg1: memref<24x128xf32, #tpu.memory_space<vmem>>, %arg2: memref<8x2xf32, #tpu.memory_space<vmem>>, %arg3: memref<4x2xf32, #tpu.memory_space<vmem>>) attributes {dimension_semantics = [#tpu.dimension_semantics<parallel>], iteration_bounds = array<i64: 1>, scalar_prefetch = 0 : i64, scratch_operands = 0 : i64, tpu.core_type = #tpu.core_type<tc>, window_params = [{pipeline_mode = #tpu.pipeline_mode<synchronous>, transform_indices = @transform_0, window_bounds = array<i64: 24, 128>}, {transform_indices = @transform_1, window_bounds = array<i64: 8, 2>}, {transform_indices = @transform_2, window_bounds = array<i64: 4, 2>}]} {
    %c0 = arith.constant 0 : index
    %c0_0 = arith.constant 0 : index
    %0 = vector.load %arg1[%c0, %c0_0] : memref<24x128xf32, #tpu.memory_space<vmem>>, vector<24x128xf32>
    %1 = vector.extract_strided_slice %0 {offsets = [0, 0], sizes = [16, 8], strides = [1, 1]} : vector<24x128xf32> to vector<16x8xf32>
    %2 = vector.extract_strided_slice %0 {offsets = [0, 8], sizes = [16, 1], strides = [1, 1]} : vector<24x128xf32> to vector<16x1xf32>
    %3 = vector.extract_strided_slice %0 {offsets = [16, 0], sizes = [4, 16], strides = [1, 1]} : vector<24x128xf32> to vector<4x16xf32>
    %4 = vector.extract_strided_slice %0 {offsets = [16, 16], sizes = [4, 1], strides = [1, 1]} : vector<24x128xf32> to vector<4x1xf32>
    %c0_1 = arith.constant 0 : index
    %c0_2 = arith.constant 0 : index
    %5 = vector.load %arg2[%c0_1, %c0_2] : memref<8x2xf32, #tpu.memory_space<vmem>>, vector<8x2xf32>
    %cst = arith.constant dense<0.000000e+00> : vector<16x2xf32>
    %6 = tpu.matmul %1, %5, %cst {dimension_numbers = #tpu.dot_dimension_numbers<[1], [0], [0], [1], [0, 0, 1, 1], [], []>} : vector<16x8xf32>, vector<8x2xf32>, vector<16x2xf32> -> vector<16x2xf32>
    %7 = vector.broadcast %2 : vector<16x1xf32> to vector<16x2xf32>
    %8 = arith.addf %6, %7 : vector<16x2xf32>
    %cst_3 = arith.constant 0.000000e+00 : f32
    %9 = vector.broadcast %cst_3 : f32 to vector<16x2xf32>
    %10 = arith.maximumf %8, %9 : vector<16x2xf32>
    %cst_4 = arith.constant dense<0.000000e+00> : vector<4x2xf32>
    %11 = tpu.matmul %3, %10, %cst_4 {dimension_numbers = #tpu.dot_dimension_numbers<[1], [0], [0], [1], [0, 0, 1, 1], [], []>} : vector<4x16xf32>, vector<16x2xf32>, vector<4x2xf32> -> vector<4x2xf32>
    %12 = vector.broadcast %4 : vector<4x1xf32> to vector<4x2xf32>
    %13 = arith.addf %11, %12 : vector<4x2xf32>
    %cst_5 = arith.constant 0.000000e+00 : f32
    %14 = vector.broadcast %cst_5 : f32 to vector<4x2xf32>
    %15 = arith.maximumf %13, %14 : vector<4x2xf32>
    %c0_6 = arith.constant 0 : index
    %c0_7 = arith.constant 0 : index
    %16 = vector.load %arg3[%c0_6, %c0_7] : memref<4x2xf32, #tpu.memory_space<vmem>>, vector<4x2xf32>
    tpu.vector_store %arg3[%c0_6, %c0_7], %15 {strides = array<i32>} : memref<4x2xf32, #tpu.memory_space<vmem>>, vector<4x2xf32>,
    return
  }
  func.func @transform_0(%arg0: i32) -> (i32, i32) {
    %c0_i32 = arith.constant 0 : i32
    %c0_i32_0 = arith.constant 0 : i32
    %c0_i32_1 = arith.constant 0 : i32
    return %c0_i32, %c0_i32_0 : i32, i32
  }
  func.func @transform_1(%arg0: i32) -> (i32, i32) {
    %c0_i32 = arith.constant 0 : i32
    %c0_i32_0 = arith.constant 0 : i32
    return %c0_i32, %arg0 : i32, i32
  }
  func.func @transform_2(%arg0: i32) -> (i32, i32) {
    %c0_i32 = arith.constant 0 : i32
    %c0_i32_0 = arith.constant 0 : i32
    return %c0_i32, %arg0 : i32, i32
  }
}

</mosaic_0001>

<llo_original>
// kernel: mlp_forward.1
$region0: #{mlp_forward.1}
  #allocation0 [shape = 'u32[]', space=smem, size = 0x4, offset = 0x4, fixed_abs, tag = 'smem constant byte address 0x4 - core index']
  #allocation1 [shape = 'u32[144,128]{1,0:T(1,128)}', space=vmem, size = 0x12000, scoped, tag = 'internal scratch']
  %s0 = inlined_call_operand.vmem [shape: f32[24,128], index: 0, kind: input, shape index: {}]
  %s1 = inlined_call_operand.vmem [shape: f32[8,2], index: 1, kind: input, shape index: {}]
  %s2 = inlined_call_operand.vmem [shape: f32[4,2], index: 2, kind: output, shape index: {}]
  %s3 = sld [smem:[#allocation0]]
  $region18: #{mlp_forward.1} parent=0
    _
  %s5 = ssub.s32 1, %s3
  %s6 = scalar_select 0, %s5, %s3
  // Predicated region
  $region2: #{mlp_forward.1} parent=0 // pred_check
    _
  $region3: #{mlp_forward.1} parent=0 // pred_check_branch
    %8 = sbr.rel (0) target = $region5
  $region4: #{mlp_forward.1} parent=0 // pred_region
    _
  $region5: #{mlp_forward.1} parent=0 // pred_fallthru
    _
  // Predicated region
  $region6: #{mlp_forward.1} parent=0 // pred_check
    _
  $region7: #{mlp_forward.1} parent=0 // pred_check_branch
    %10 = sbr.rel (0) target = $region9
  $region8: #{mlp_forward.1} parent=0 // pred_region
    _
  $region9: #{mlp_forward.1} parent=0 // pred_fallthru
    _
  %v11 = vld [vmem:[%s0] sm:$0xff]
  %v12 = vld [vmem:[%s0 + $0x8] sm:$0xff]
  %v13 = vld [vmem:[%s0 + $0x10] sm:$0xff]
  %v14 = vld [vmem:[%s1] sm:$0xff]
  %16 = vset.pattern.permute.xlu0 8
  %17 = vperm.xlu0 %16, %v11
  %v18 = vpop.permute.xlu0 %17
  %21 = vset.pattern.permute.xlu0 8
  %22 = vperm.xlu0 %21, %v12
  %v23 = vpop.permute.xlu0 %22
  %vm25 = vcmask 64512
  %v26 = vsel %vm25, %v11, 0
  %v28 = vsel %vm25, %v12, 0
  %30 = vmatprep.subr.mxu0 0.0
  %31 = vmatpush1.msra.mxu0 0.0
  %32 = vmatprep.subr.mxu0 0.0
  %33 = vmatpush1.msra.mxu0 0.0
  %34 = vmatprep.subr.mxu0 0.0
  %35 = vmatpush1.msra.mxu0 0.0
  %36 = vmatprep.subr.mxu0 0.0
  %37 = vmatpush1.msra.mxu0 0.0
  %38 = vmatprep.subr.mxu0 0.0
  %39 = vmatpush1.msra.mxu0 0.0
  %40 = vmatprep.subr.mxu0 0.0
  %41 = vmatpush1.msra.mxu0 0.0
  %42 = vmatprep.subr.mxu0 0.0
  %43 = vmatpush1.msra.mxu0 0.0
  %44 = vmatprep.subr.mxu0 0.0
  %45 = vmatpush1.msra.mxu0 0.0
  %46 = vmatprep.subr.mxu0 0.0
  %47 = vmatpush1.msra.mxu0 0.0
  %48 = vmatprep.subr.mxu0 0.0
  %49 = vmatpush1.msra.mxu0 0.0
  %50 = vmatprep.subr.mxu0 0.0
  %51 = vmatpush1.msra.mxu0 0.0
  %52 = vmatprep.subr.mxu0 0.0
  %53 = vmatpush1.msra.mxu0 0.0
  %54 = vmatprep.subr.mxu0 0.0
  %55 = vmatpush1.msra.mxu0 0.0
  %56 = vmatprep.subr.mxu0 0.0
  %57 = vmatpush1.msra.mxu0 0.0
  %58 = vmatprep.subr.mxu0 0.0
  %59 = vmatpush1.msra.mxu0 0.0
  %60 = vmatprep.subr.mxu0 0.0
  %61 = vmatpush1.msra.mxu0 %v14
  %62 = vmatprep.subr.mxu0 0.0
  %63 = vmatpush2.msra.mxu0 0.0
  %64 = vmatprep.subr.mxu0 0.0
  %65 = vmatpush2.msra.mxu0 0.0
  %66 = vmatprep.subr.mxu0 0.0
  %67 = vmatpush2.msra.mxu0 0.0
  %68 = vmatprep.subr.mxu0 0.0
  %69 = vmatpush2.msra.mxu0 0.0
  %70 = vmatprep.subr.mxu0 0.0
  %71 = vmatpush2.msra.mxu0 0.0
  %72 = vmatprep.subr.mxu0 0.0
  %73 = vmatpush2.msra.mxu0 0.0
  %74 = vmatprep.subr.mxu0 0.0
  %75 = vmatpush2.msra.mxu0 0.0
  %76 = vmatprep.subr.mxu0 0.0
  %77 = vmatpush2.msra.mxu0 0.0
  %78 = vmatprep.subr.mxu0 0.0
  %79 = vmatpush2.msra.mxu0 0.0
  %80 = vmatprep.subr.mxu0 0.0
  %81 = vmatpush2.msra.mxu0 0.0
  %82 = vmatprep.subr.mxu0 0.0
  %83 = vmatpush2.msra.mxu0 0.0
  %84 = vmatprep.subr.mxu0 0.0
  %85 = vmatpush2.msra.mxu0 0.0
  %86 = vmatprep.subr.mxu0 0.0
  %87 = vmatpush2.msra.mxu0 0.0
  %88 = vmatprep.subr.mxu0 0.0
  %89 = vmatpush2.msra.mxu0 0.0
  %90 = vmatprep.subr.mxu0 0.0
  %91 = vmatpush2.msra.mxu0 0.0
  %92 = vmatprep.subr.mxu0 0.0
  %93 = vmatpush2.msra.mxu0 0.0
  %94 = vmatprep.mubr.f32.mxu0 0.0
  %95 = vmatmul.mubr.f32.gmra.mxu0 %v26
  %v96 = vpop.f32.mrf.mxu0
  %v97 = vadd.f32 %v18, %v96
  %v98 = vpop.f32.mrf.mxu0
  %99 = vmatprep.mubr.f32.mxu0 0.0
  %100 = vmatmul.mubr.f32.gmra.mxu0 %v28
  %v101 = vpop.f32.mrf.mxu0
  %v102 = vadd.f32 %v23, %v101
  %v103 = vpop.f32.mrf.mxu0
  %104 = vdwg.mxu0
  %v105 = vmax.f32 %v97, 0.0
  %v106 = vmax.f32 %v102, 0.0
  %108 = vset.pattern.permute.xlu0 16
  %109 = vperm.xlu0 %108, %v13
  %v110 = vpop.permute.xlu0 %109
  %vm112 = vcmask 130048
  %v113 = vsel %vm112, %v13, 0
  %115 = vmatprep.subr.mxu0 0.0
  %116 = vmatpush1.msra.mxu0 0.0
  %117 = vmatprep.subr.mxu0 0.0
  %118 = vmatpush1.msra.mxu0 0.0
  %119 = vmatprep.subr.mxu0 0.0
  %120 = vmatpush1.msra.mxu0 0.0
  %121 = vmatprep.subr.mxu0 0.0
  %122 = vmatpush1.msra.mxu0 0.0
  %123 = vmatprep.subr.mxu0 0.0
  %124 = vmatpush1.msra.mxu0 0.0
  %125 = vmatprep.subr.mxu0 0.0
  %126 = vmatpush1.msra.mxu0 0.0
  %127 = vmatprep.subr.mxu0 0.0
  %128 = vmatpush1.msra.mxu0 0.0
  %129 = vmatprep.subr.mxu0 0.0
  %130 = vmatpush1.msra.mxu0 0.0
  %131 = vmatprep.subr.mxu0 0.0
  %132 = vmatpush1.msra.mxu0 0.0
  %133 = vmatprep.subr.mxu0 0.0
  %134 = vmatpush1.msra.mxu0 0.0
  %135 = vmatprep.subr.mxu0 0.0
  %136 = vmatpush1.msra.mxu0 0.0
  %137 = vmatprep.subr.mxu0 0.0
  %138 = vmatpush1.msra.mxu0 0.0
  %139 = vmatprep.subr.mxu0 0.0
  %140 = vmatpush1.msra.mxu0 0.0
  %141 = vmatprep.subr.mxu0 0.0
  %142 = vmatpush1.msra.mxu0 0.0
  %143 = vmatprep.subr.mxu0 0.0
  %144 = vmatpush1.msra.mxu0 %v106
  %145 = vmatprep.subr.mxu0 0.0
  %146 = vmatpush1.msra.mxu0 %v105
  %147 = vmatprep.subr.mxu0 0.0
  %148 = vmatpush2.msra.mxu0 0.0
  %149 = vmatprep.subr.mxu0 0.0
  %150 = vmatpush2.msra.mxu0 0.0
  %151 = vmatprep.subr.mxu0 0.0
  %152 = vmatpush2.msra.mxu0 0.0
  %153 = vmatprep.subr.mxu0 0.0
  %154 = vmatpush2.msra.mxu0 0.0
  %155 = vmatprep.subr.mxu0 0.0
  %156 = vmatpush2.msra.mxu0 0.0
  %157 = vmatprep.subr.mxu0 0.0
  %158 = vmatpush2.msra.mxu0 0.0
  %159 = vmatprep.subr.mxu0 0.0
  %160 = vmatpush2.msra.mxu0 0.0
  %161 = vmatprep.subr.mxu0 0.0
  %162 = vmatpush2.msra.mxu0 0.0
  %163 = vmatprep.subr.mxu0 0.0
  %164 = vmatpush2.msra.mxu0 0.0
  %165 = vmatprep.subr.mxu0 0.0
  %166 = vmatpush2.msra.mxu0 0.0
  %167 = vmatprep.subr.mxu0 0.0
  %168 = vmatpush2.msra.mxu0 0.0
  %169 = vmatprep.subr.mxu0 0.0
  %170 = vmatpush2.msra.mxu0 0.0
  %171 = vmatprep.subr.mxu0 0.0
  %172 = vmatpush2.msra.mxu0 0.0
  %173 = vmatprep.subr.mxu0 0.0
  %174 = vmatpush2.msra.mxu0 0.0
  %175 = vmatprep.subr.mxu0 0.0
  %176 = vmatpush2.msra.mxu0 0.0
  %177 = vmatprep.subr.mxu0 0.0
  %178 = vmatpush2.msra.mxu0 0.0
  %179 = vmatprep.mubr.f32.mxu0 0.0
  %180 = vmatmul.mubr.f32.gmra.mxu0 %v113
  %v181 = vpop.f32.mrf.mxu0
  %v182 = vadd.f32 %v110, %v181
  %v183 = vpop.f32.mrf.mxu0
  %184 = vdwg.mxu0
  %v185 = vmax.f32 %v182, 0.0
  %vm186 = vcmask 11264
  %187 = vst.msk [vmem:[%s2] sm:$0xf] %vm186, %v185
  // Predicated region
  $region10: #{mlp_forward.1} parent=0 // pred_check
    _
  $region11: #{mlp_forward.1} parent=0 // pred_check_branch
    %189 = sbr.rel (0) target = $region13
  $region12: #{mlp_forward.1} parent=0 // pred_region
    _
  $region13: #{mlp_forward.1} parent=0 // pred_fallthru
    _
  // Predicated region
  $region14: #{mlp_forward.1} parent=0 // pred_check
    _
  $region15: #{mlp_forward.1} parent=0 // pred_check_branch
    %191 = sbr.rel (0) target = $region17
  $region16: #{mlp_forward.1} parent=0 // pred_region
    _
  $region17: #{mlp_forward.1} parent=0 // pred_fallthru
    _

</llo_original>
